<compile_context>
chip_gen: v7x
topology: tpu7x:2x2x1
jax: 0.10.0
libtpu: 0.0.40
codegen_flags: <defaults>
</compile_context>

<pallas_src>
import functools

import jax
import jax.numpy as jnp
from jax.experimental import pallas as pl
from jax.experimental.pallas import tpu as pltpu

LANE = 128
BLOCK_R_MAX = 2048   # (2048, 128) f32 block = 1 MiB per input per buffer
NUM_CORES = 2        # megacore split of the row range (v7x); sequential on 1-TC chips


def _cdiv(a, b):
    return -(-a // b)


def _round_up(a, b):
    return _cdiv(a, b) * b


def _vfl_kernel(pred_ref, gt_ref, label_ref, out_ref, *,
                alpha, gamma, rows, block_r, steps_per_core, need_mask):
    c = pl.program_id(0)   # "parallel" axis (per-TensorCore slice)
    j = pl.program_id(1)   # "arbitrary" reduction axis

    # Output block index depends only on c -> resident (8,128) accumulator per core.
    @pl.when(j == 0)
    def _():
        out_ref[...] = jnp.zeros_like(out_ref)

    x = pred_ref[...].astype(jnp.float32)      # logits
    z = gt_ref[...].astype(jnp.float32)        # soft targets (gt_score)
    lab = label_ref[...].astype(jnp.float32)   # binary label

    if need_mask:
        # Zero out rows past the real data (grid tail / fully OOB logical blocks).
        # Fill values x=0, z=0, lab=1 give weight == 0 -> zero contribution, no NaN/Inf.
        start = (c * steps_per_core + j) * block_r
        row_ids = jax.lax.broadcasted_iota(jnp.int32, (block_r, 1), 0) + start
        valid = row_ids < rows
        x = jnp.where(valid, x, 0.0)
        z = jnp.where(valid, z, 0.0)
        lab = jnp.where(valid, lab, 1.0)

    # e = exp(-|x|) is reused for both the sigmoid and the stable BCE log term.
    e = jnp.exp(-jnp.abs(x))
    inv = pl.reciprocal(1.0 + e, approx=False)          # exact; EUP
    sig = jnp.where(x >= 0.0, inv, e * inv)              # sigmoid(x)

    g = float(gamma)
    if g == int(g) and 0 <= int(g) <= 8:
        # Integer-gamma fast path: exact, no exp/log on the EUP.
        gi = int(g)
        if gi == 0:
            pw = jnp.ones_like(sig)
        else:
            pw = sig
            for _ in range(gi - 1):
                pw = pw * sig
    else:
        pw = sig ** g

    # weight = alpha * sigmoid(x)^gamma * (1 - label) + gt_score * label
    weight = alpha * pw * (1.0 - lab) + z * lab

    # binary_cross_entropy_with_logits, reduction='none' (numerically stable):
    #   max(x, 0) - x*z + log(1 + exp(-|x|))
    bce = jnp.maximum(x, 0.0) - x * z + jnp.log1p(e)
    contrib = bce * weight

    # VPU partial reduce of the big block into the small resident accumulator;
    # the single cross-lane reduce happens on the tiny output in the wrapper.
    out_ref[...] += jnp.sum(contrib.reshape(block_r // 8, 8, LANE), axis=0)


def varifocal_loss(pred_score, gt_score, label, alpha=0.75, gamma=2.0):
    """Pallas TPU implementation of VarifocalLoss.forward (scalar sum loss)."""
    n = pred_score.size
    pred_f = pred_score.reshape(-1)
    gt_f = gt_score.reshape(-1)
    lab_f = label.reshape(-1)

    pad = (-n) % LANE
    if pad:  # only materialize a pad copy when the size is not lane-aligned
        # Padded elements: label=1, gt=0 -> weight = 0 -> zero contribution.
        pred_f = jnp.pad(pred_f, (0, pad))
        gt_f = jnp.pad(gt_f, (0, pad))
        lab_f = jnp.pad(lab_f, (0, pad), constant_values=1)
    rows = (n + pad) // LANE

    block_r = min(BLOCK_R_MAX, _round_up(rows, 8))
    total_blocks = _cdiv(rows, block_r)
    steps = _cdiv(total_blocks, NUM_CORES)
    need_mask = (NUM_CORES * steps * block_r) != rows

    pred2 = pred_f.reshape(rows, LANE)
    gt2 = gt_f.reshape(rows, LANE)
    lab2 = lab_f.reshape(rows, LANE)

    kernel = functools.partial(
        _vfl_kernel, alpha=float(alpha), gamma=float(gamma), rows=rows,
        block_r=block_r, steps_per_core=steps, need_mask=need_mask)

    def in_idx(c, j):
        # Clamp so the DMA never starts past the last (possibly partial) block;
        # fully out-of-range logical blocks are zeroed by the in-kernel row mask.
        return (jnp.minimum(c * steps + j, total_blocks - 1), 0)

    in_spec = pl.BlockSpec((block_r, LANE), in_idx)

    bytes_in = (pred2.size * pred2.dtype.itemsize
                + gt2.size * gt2.dtype.itemsize
                + lab2.size * lab2.dtype.itemsize)

    out = pl.pallas_call(
        kernel,
        out_shape=jax.ShapeDtypeStruct((NUM_CORES * 8, LANE), jnp.float32),
        grid_spec=pltpu.PrefetchScalarGridSpec(
            num_scalar_prefetch=0,
            grid=(NUM_CORES, steps),
            in_specs=[in_spec, in_spec, in_spec],
            out_specs=pl.BlockSpec((8, LANE), lambda c, j: (c, 0)),
        ),
        compiler_params=pltpu.CompilerParams(
            dimension_semantics=("parallel", "arbitrary")),
        cost_estimate=pl.CostEstimate(
            flops=14 * n,
            transcendentals=3 * n,
            bytes_accessed=bytes_in + NUM_CORES * 8 * LANE * 4),
    )(pred2, gt2, lab2)

    # Tiny (2*8, 128) cross-lane reduce done once, outside the kernel.
    return jnp.sum(out)


def _reference(pred_score, gt_score, label, alpha=0.75, gamma=2.0):
    x = pred_score.astype(jnp.float32)
    z = gt_score.astype(jnp.float32)
    lab = label.astype(jnp.float32)
    weight = alpha * (jax.nn.sigmoid(x) ** gamma) * (1.0 - lab) + z * lab
    bce = jnp.maximum(x, 0.0) - x * z + jnp.log1p(jnp.exp(-jnp.abs(x)))
    return jnp.sum(bce * weight)


if __name__ == "__main__":
    key = jax.random.PRNGKey(0)

    # (batch, num_anchors, num_classes) YOLO-classification-head-like shapes:
    #   1) small, lane-aligned (no pad, partial block, clamped OOB core block)
    #   2) small, unaligned (pad path + in-kernel mask)
    #   3) larger, multi-step reduction per core (exercises accumulation + clamp)
    shapes = [(2, 64, 4), (3, 100, 7), (4, 2100, 80)]

    for s_idx, shape in enumerate(shapes):
        k1, k2, k3 = jax.random.split(jax.random.fold_in(key, s_idx), 3)
        pred_score = jax.random.normal(k1, shape, dtype=jnp.float32) * 2.0
        gt_score = jax.random.uniform(k2, shape, dtype=jnp.float32)
        label = (jax.random.uniform(k3, shape) > 0.7).astype(jnp.float32)

        loss = jax.block_until_ready(varifocal_loss(pred_score, gt_score, label))
        ref = jax.block_until_ready(_reference(pred_score, gt_score, label))
        assert jnp.allclose(loss, ref, rtol=1e-5, atol=1e-4), (shape, loss, ref)

    print("KERNEL_OK")
</pallas_src>

<mosaic_0001>
module attributes {stable_mosaic.version = 11 : i64} {
  func.func @_vfl_kernel(%arg0: i32, %arg1: i32, %arg2: memref<8x128xf32, #tpu.memory_space<vmem>>, %arg3: memref<8x128xf32, #tpu.memory_space<vmem>>, %arg4: memref<8x128xf32, #tpu.memory_space<vmem>>, %arg5: memref<8x128xf32, #tpu.memory_space<vmem>>) attributes {dimension_semantics = [#tpu.dimension_semantics<parallel>, #tpu.dimension_semantics<arbitrary>], iteration_bounds = array<i64: 2, 1>, scalar_prefetch = 0 : i64, scratch_operands = 0 : i64, tpu.core_type = #tpu.core_type<tc>, window_params = [{transform_indices = @transform_0, window_bounds = array<i64: 8, 128>}, {transform_indices = @transform_1, window_bounds = array<i64: 8, 128>}, {transform_indices = @transform_2, window_bounds = array<i64: 8, 128>}, {transform_indices = @transform_3, window_bounds = array<i64: 8, 128>}]} {
    %c0_i32 = arith.constant 0 : i32
    %0 = arith.cmpi eq, %arg1, %c0_i32 : i32
    %1 = arith.extui %0 : i1 to i32
    %c0_i32_0 = arith.constant 0 : i32
    %2 = arith.cmpi ne, %1, %c0_i32_0 : i32
    scf.if %2 {
      %cst_19 = arith.constant 0.000000e+00 : f32
      %57 = vector.broadcast %cst_19 : f32 to vector<8x128xf32>
      %c0_20 = arith.constant 0 : index
      %c0_21 = arith.constant 0 : index
      %58 = vector.load %arg5[%c0_20, %c0_21] : memref<8x128xf32, #tpu.memory_space<vmem>>, vector<8x128xf32>
      tpu.vector_store %arg5[%c0_20, %c0_21], %57 {strides = array<i32>} : memref<8x128xf32, #tpu.memory_space<vmem>>, vector<8x128xf32>,
    } else {
    }
    %c0 = arith.constant 0 : index
    %c0_1 = arith.constant 0 : index
    %3 = vector.load %arg2[%c0, %c0_1] : memref<8x128xf32, #tpu.memory_space<vmem>>, vector<8x128xf32>
    %c0_2 = arith.constant 0 : index
    %c0_3 = arith.constant 0 : index
    %4 = vector.load %arg3[%c0_2, %c0_3] : memref<8x128xf32, #tpu.memory_space<vmem>>, vector<8x128xf32>
    %c0_4 = arith.constant 0 : index
    %c0_5 = arith.constant 0 : index
    %5 = vector.load %arg4[%c0_4, %c0_5] : memref<8x128xf32, #tpu.memory_space<vmem>>, vector<8x128xf32>
    %c1_i32 = arith.constant 1 : i32
    %6 = arith.muli %arg0, %c1_i32 : i32
    %7 = arith.addi %6, %arg1 : i32
    %c8_i32 = arith.constant 8 : i32
    %8 = arith.muli %7, %c8_i32 : i32
    %9 = tpu.iota {dimensions = array<i32: 0>} : vector<8x1xi32>
    %10 = vector.broadcast %8 : i32 to vector<8x1xi32>
    %11 = arith.addi %9, %10 : vector<8x1xi32>
    %c4_i32 = arith.constant 4 : i32
    %12 = vector.broadcast %c4_i32 : i32 to vector<8x1xi32>
    %13 = arith.cmpi slt, %11, %12 : vector<8x1xi32>
    %cst = arith.constant 0.000000e+00 : f32
    %14 = vector.shape_cast %13 : vector<8x1xi1> to vector<8x1xi1>
    %15 = vector.broadcast %14 : vector<8x1xi1> to vector<8x128xi1>
    %16 = vector.broadcast %cst : f32 to vector<8x128xf32>
    %17 = arith.select %15, %3, %16 : vector<8x128xi1>, vector<8x128xf32>
    %cst_6 = arith.constant 0.000000e+00 : f32
    %18 = vector.shape_cast %13 : vector<8x1xi1> to vector<8x1xi1>
    %19 = vector.broadcast %18 : vector<8x1xi1> to vector<8x128xi1>
    %20 = vector.broadcast %cst_6 : f32 to vector<8x128xf32>
    %21 = arith.select %19, %4, %20 : vector<8x128xi1>, vector<8x128xf32>
    %cst_7 = arith.constant 1.000000e+00 : f32
    %22 = vector.shape_cast %13 : vector<8x1xi1> to vector<8x1xi1>
    %23 = vector.broadcast %22 : vector<8x1xi1> to vector<8x128xi1>
    %24 = vector.broadcast %cst_7 : f32 to vector<8x128xf32>
    %25 = arith.select %23, %5, %24 : vector<8x128xi1>, vector<8x128xf32>
    %26 = math.absf %17 : vector<8x128xf32>
    %cst_8 = arith.constant 0.000000e+00 : f32
    %27 = vector.broadcast %cst_8 : f32 to vector<8x128xf32>
    %28 = arith.subf %27, %26 : vector<8x128xf32>
    %29 = math.exp %28 : vector<8x128xf32>
    %cst_9 = arith.constant 1.000000e+00 : f32
    %30 = vector.broadcast %cst_9 : f32 to vector<8x128xf32>
    %31 = arith.addf %30, %29 : vector<8x128xf32>
    %32 = tpu.reciprocal %31 : vector<8x128xf32> -> vector<8x128xf32>
    %cst_10 = arith.constant 0.000000e+00 : f32
    %33 = vector.broadcast %cst_10 : f32 to vector<8x128xf32>
    %34 = arith.cmpf oge, %17, %33 : vector<8x128xf32>
    %35 = arith.mulf %29, %32 : vector<8x128xf32>
    %36 = arith.select %34, %32, %35 : vector<8x128xi1>, vector<8x128xf32>
    %37 = arith.mulf %36, %36 : vector<8x128xf32>
    %cst_11 = arith.constant 7.500000e-01 : f32
    %38 = vector.broadcast %cst_11 : f32 to vector<8x128xf32>
    %39 = arith.mulf %38, %37 : vector<8x128xf32>
    %cst_12 = arith.constant 1.000000e+00 : f32
    %40 = vector.broadcast %cst_12 : f32 to vector<8x128xf32>
    %41 = arith.subf %40, %25 : vector<8x128xf32>
    %42 = arith.mulf %39, %41 : vector<8x128xf32>
    %43 = arith.mulf %21, %25 : vector<8x128xf32>
    %44 = arith.addf %42, %43 : vector<8x128xf32>
    %cst_13 = arith.constant 0.000000e+00 : f32
    %45 = vector.broadcast %cst_13 : f32 to vector<8x128xf32>
    %46 = arith.maximumf %17, %45 : vector<8x128xf32>
    %47 = arith.mulf %17, %21 : vector<8x128xf32>
    %48 = arith.subf %46, %47 : vector<8x128xf32>
    %49 = math.log1p %29 : vector<8x128xf32>
    %50 = arith.addf %48, %49 : vector<8x128xf32>
    %51 = arith.mulf %50, %44 : vector<8x128xf32>
    %c0_14 = arith.constant 0 : index
    %c0_15 = arith.constant 0 : index
    %52 = vector.load %arg5[%c0_14, %c0_15] : memref<8x128xf32, #tpu.memory_space<vmem>>, vector<8x128xf32>
    %53 = vector.shape_cast %51 : vector<8x128xf32> to vector<1x8x128xf32>
    %cst_16 = arith.constant dense<0.000000e+00> : vector<8x128xf32>
    %54 = vector.multi_reduction <add>, %53, %cst_16 [0] : vector<1x8x128xf32> to vector<8x128xf32>
    %55 = arith.addf %52, %54 : vector<8x128xf32>
    %c0_17 = arith.constant 0 : index
    %c0_18 = arith.constant 0 : index
    %56 = vector.load %arg5[%c0_17, %c0_18] : memref<8x128xf32, #tpu.memory_space<vmem>>, vector<8x128xf32>
    tpu.vector_store %arg5[%c0_17, %c0_18], %55 {strides = array<i32>} : memref<8x128xf32, #tpu.memory_space<vmem>>, vector<8x128xf32>,
    return
  }
  func.func @transform_0(%arg0: i32, %arg1: i32) -> (i32, i32) {
    %c1_i32 = arith.constant 1 : i32
    %0 = arith.muli %arg0, %c1_i32 : i32
    %1 = arith.addi %0, %arg1 : i32
    %c0_i32 = arith.constant 0 : i32
    %2 = arith.minsi %1, %c0_i32 : i32
    %c0_i32_0 = arith.constant 0 : i32
    %c0_i32_1 = arith.constant 0 : i32
    return %2, %c0_i32_0 : i32, i32
  }
  func.func @transform_1(%arg0: i32, %arg1: i32) -> (i32, i32) {
    %c1_i32 = arith.constant 1 : i32
    %0 = arith.muli %arg0, %c1_i32 : i32
    %1 = arith.addi %0, %arg1 : i32
    %c0_i32 = arith.constant 0 : i32
    %2 = arith.minsi %1, %c0_i32 : i32
    %c0_i32_0 = arith.constant 0 : i32
    %c0_i32_1 = arith.constant 0 : i32
    return %2, %c0_i32_0 : i32, i32
  }
  func.func @transform_2(%arg0: i32, %arg1: i32) -> (i32, i32) {
    %c1_i32 = arith.constant 1 : i32
    %0 = arith.muli %arg0, %c1_i32 : i32
    %1 = arith.addi %0, %arg1 : i32
    %c0_i32 = arith.constant 0 : i32
    %2 = arith.minsi %1, %c0_i32 : i32
    %c0_i32_0 = arith.constant 0 : i32
    %c0_i32_1 = arith.constant 0 : i32
    return %2, %c0_i32_0 : i32, i32
  }
  func.func @transform_3(%arg0: i32, %arg1: i32) -> (i32, i32) {
    %c0_i32 = arith.constant 0 : i32
    %c0_i32_0 = arith.constant 0 : i32
    return %arg0, %c0_i32 : i32, i32
  }
}

</mosaic_0001>

<llo_original>
// kernel: tpu_custom_call.1
$region0: #{tpu_custom_call.1}
  #allocation0 [shape = 'u32[]', space=smem, size = 0x4, offset = 0x4, fixed_abs, tag = 'smem constant byte address 0x4 - core index']
  #allocation1 [shape = 'u32[144,128]{1,0:T(1,128)}', space=vmem, size = 0x12000, scoped, tag = 'internal scratch']
  %s0 = inlined_call_operand.hbm [shape: f32[4,128], index: 0, kind: input, shape index: {}]
  %s1 = inlined_call_operand.hbm [shape: f32[4,128], index: 1, kind: input, shape index: {}]
  %s2 = inlined_call_operand.vmem [shape: f32[4,128], index: 2, kind: input, shape index: {}]
  %s3 = inlined_call_operand.hbm [shape: f32[16,128], index: 3, kind: output, shape index: {}]
  %s4 = sld [smem:[#allocation0]]
  $region57: #{tpu_custom_call.1} parent=0
    _
  %s6 = ssub.s32 1, %s4
  %s7 = scalar_select 0, %s6, %s4
  $region1: #{tpu_custom_call.1} parent=0
    #allocation2 [shape = 'u8[8192]{0}', space=vmem, size = 0x2000, scoped, tag = 'input window, operand 0']
    #allocation3 [shape = 's32[2]{0}', space=sflag, size = 0x8, scoped, tag = 'scoped memory for tpu_custom_call.1']
    #allocation4 [shape = 's32[2]{0}', space=sflag, size = 0x8, scoped, tag = 'scoped memory for tpu_custom_call.1']
    #allocation5 [shape = 'u8[8192]{0}', space=vmem, size = 0x2000, scoped, tag = 'input window, operand 1']
    #allocation6 [shape = 's32[2]{0}', space=sflag, size = 0x8, scoped, tag = 'scoped memory for tpu_custom_call.1']
    #allocation7 [shape = 'u8[8192]{0}', space=vmem, size = 0x2000, scoped, tag = 'output window, operand 0']
    %8 = vsyncpa [#allocation3], 0
    %s9 = scalar_lea.sflag [#allocation3], 1
    %10 = vsyncpa %s9, 0
    %11 = vsyncpa [#allocation6], 0
    %s12 = scalar_lea.sflag [#allocation6], 1
    %13 = vsyncpa %s12, 0
    %14 = vsyncpa [#allocation4], 0
    %s15 = scalar_lea.sflag [#allocation4], 1
    %16 = vsyncpa %s15, 0
    loop: start=0, step=1, limit=4
    $region2: #{tpu_custom_call.1} parent=1 // loop_pre_header
      _
    $region3: #{tpu_custom_call.1} parent=1 // loop_header
      %s18 = sphi 0, %s22
      %p19 = scmp.ge.s32.totalorder %s18, 4
      %s25 = sphi 0, %s37
      %s26 = sphi 0, %s33
      %s27 = sphi 0, %s25
      %s28 = sphi 0, %s26
      %s29 = sphi 0, %s27
      %s30 = sphi 0, %s28
      %s46 = sphi 0, %s48
      %s49 = sphi 0, %s46
      %s50 = sphi 0, %s49
      %s66 = sphi 0, %s50
      %s78 = sphi 0, %s80
      %s81 = sphi 0, %s78
      %s82 = sphi 0, %s81
      %s98 = sphi 0, %s82
      %s110 = sphi 0, %s112
      %s113 = sphi 0, %s110
      %s114 = sphi 0, %s113
      %s130 = sphi 0, %s114
      %s136 = sphi 0, %s138
      %s139 = sphi 0, %s136
      %s140 = sphi 0, %s139
      %s156 = sphi 0, %s140
    $region4: #{tpu_custom_call.1} parent=1 // loop_header_branch
      %21 = sbr.rel (%p19) target = $region8
    $region5: #{tpu_custom_call.1} parent=1 // loop_body
      %s23 = ssub.s32 %s18, 1
      %s24 = ssub.s32 %s18, 2
      %s31 = sadd.s32 1, %s26
      %p32 = scmp.ge.s32.totalorder %s31, 1
      %s33 = scalar_select %p32, 0, %s31
      %s34 = sadd.s32 1, %s25
      %s35 = scalar_select %p32, %s34, %s25
      %p36 = scmp.ge.s32.totalorder %s35, 2
      %s37 = scalar_select %p36, 0, %s35
      %s38 = sadd.s32 %s25, %s26
      %p39 = scmp.lt.s32.totalorder %s38, 0
      %s40 = scalar_select %p39, %s38, 0
      %s41 = sadd.s32 %s37, %s33
      %p42 = scmp.lt.s32.totalorder %s41, 0
      %s43 = scalar_select %p42, %s41, 0
      %s44 = ssub.s32 %s40, %s43
      %p45 = scmp.eq.s32.totalorder %s44, 0
      %s47 = sadd.s32 %s46, 1
      %s48 = scalar_select %p45, %s46, %s47
      %p51 = pneg %p45
      %p52 = scmp.eq.s32.totalorder %s18, 1
      %p53 = por %p51, %p52
      %p54 = scmp.ne.s32.totalorder %s46, %s49
      %p55 = scmp.eq.s32.totalorder %s18, 0
      %p56 = por %p54, %p55
      %p57 = scmp.ne.s32.totalorder %s46, %s49
      %p58 = scmp.eq.s32.totalorder %s23, 1
      %p59 = por %p57, %p58
      %p60 = scmp.ne.s32.totalorder %s49, %s50
      %p61 = scmp.eq.s32.totalorder %s23, 0
      %p62 = por %p60, %p61
      %p63 = scmp.ne.s32.totalorder %s49, %s50
      %p64 = scmp.eq.s32.totalorder %s24, 1
      %p65 = por %p63, %p64
      %p67 = scmp.ne.s32.totalorder %s50, %s66
      %p68 = scmp.eq.s32.totalorder %s24, 0
      %p69 = por %p67, %p68
      %s70 = sadd.s32 %s25, %s26
      %p71 = scmp.lt.s32.totalorder %s70, 0
      %s72 = scalar_select %p71, %s70, 0
      %s73 = sadd.s32 %s37, %s33
      %p74 = scmp.lt.s32.totalorder %s73, 0
      %s75 = scalar_select %p74, %s73, 0
      %s76 = ssub.s32 %s72, %s75
      %p77 = scmp.eq.s32.totalorder %s76, 0
      %s79 = sadd.s32 %s78, 1
      %s80 = scalar_select %p77, %s78, %s79
      %p83 = pneg %p77
      %p84 = scmp.eq.s32.totalorder %s18, 1
      %p85 = por %p83, %p84
      %p86 = scmp.ne.s32.totalorder %s78, %s81
      %p87 = scmp.eq.s32.totalorder %s18, 0
      %p88 = por %p86, %p87
      %p89 = scmp.ne.s32.totalorder %s78, %s81
      %p90 = scmp.eq.s32.totalorder %s23, 1
      %p91 = por %p89, %p90
      %p92 = scmp.ne.s32.totalorder %s81, %s82
      %p93 = scmp.eq.s32.totalorder %s23, 0
      %p94 = por %p92, %p93
      %p95 = scmp.ne.s32.totalorder %s81, %s82
      %p96 = scmp.eq.s32.totalorder %s24, 1
      %p97 = por %p95, %p96
      %p99 = scmp.ne.s32.totalorder %s82, %s98
      %p100 = scmp.eq.s32.totalorder %s24, 0
      %p101 = por %p99, %p100
      %s102 = sadd.s32 %s25, %s26
      %p103 = scmp.lt.s32.totalorder %s102, 0
      %s104 = scalar_select %p103, %s102, 0
      %s105 = sadd.s32 %s37, %s33
      %p106 = scmp.lt.s32.totalorder %s105, 0
      %s107 = scalar_select %p106, %s105, 0
      %s108 = ssub.s32 %s104, %s107
      %p109 = scmp.eq.s32.totalorder %s108, 0
      %s111 = sadd.s32 %s110, 1
      %s112 = scalar_select %p109, %s110, %s111
      %p115 = pneg %p109
      %p116 = scmp.eq.s32.totalorder %s18, 1
      %p117 = por %p115, %p116
      %p118 = scmp.ne.s32.totalorder %s110, %s113
      %p119 = scmp.eq.s32.totalorder %s18, 0
      %p120 = por %p118, %p119
      %p121 = scmp.ne.s32.totalorder %s110, %s113
      %p122 = scmp.eq.s32.totalorder %s23, 1
      %p123 = por %p121, %p122
      %p124 = scmp.ne.s32.totalorder %s113, %s114
      %p125 = scmp.eq.s32.totalorder %s23, 0
      %p126 = por %p124, %p125
      %p127 = scmp.ne.s32.totalorder %s113, %s114
      %p128 = scmp.eq.s32.totalorder %s24, 1
      %p129 = por %p127, %p128
      %p131 = scmp.ne.s32.totalorder %s114, %s130
      %p132 = scmp.eq.s32.totalorder %s24, 0
      %p133 = por %p131, %p132
      %s134 = ssub.s32 %s25, %s37
      %p135 = scmp.eq.s32.totalorder %s134, 0
      %s137 = sadd.s32 %s136, 1
      %s138 = scalar_select %p135, %s136, %s137
      %p141 = pneg %p135
      %p142 = scmp.eq.s32.totalorder %s18, 1
      %p143 = por %p141, %p142
      %p144 = scmp.ne.s32.totalorder %s136, %s139
      %p145 = scmp.eq.s32.totalorder %s18, 0
      %p146 = por %p144, %p145
      %p147 = scmp.ne.s32.totalorder %s136, %s139
      %p148 = scmp.eq.s32.totalorder %s23, 1
      %p149 = por %p147, %p148
      %p150 = scmp.ne.s32.totalorder %s139, %s140
      %p151 = scmp.eq.s32.totalorder %s23, 0
      %p152 = por %p150, %p151
      %p153 = scmp.ne.s32.totalorder %s139, %s140
      %p154 = scmp.eq.s32.totalorder %s24, 1
      %p155 = por %p153, %p154
      %p157 = scmp.ne.s32.totalorder %s140, %s156
      %p158 = scmp.eq.s32.totalorder %s24, 0
      %p159 = por %p157, %p158
      %p160 = scmp.le.s32.totalorder 1, %s18
      %p161 = scmp.lt.s32.totalorder %s18, 3
      %p162 = pnand %p160, %p161
      %p163 = pneg %p162
      // Predicated region
      $region9: #{tpu_custom_call.1} parent=5 // pred_check
        _
      $region10: #{tpu_custom_call.1} parent=5 // pred_check_branch
        %165 = sbr.rel (%p162) target = $region12
      $region11: #{tpu_custom_call.1} parent=5 // pred_region
        %s166 = ssub.s32 %s18, 1
      $region12: #{tpu_custom_call.1} parent=5 // pred_fallthru
        _
      %p167 = scmp.lt.s32.totalorder %s18, 2
      // Predicated region
      $region13: #{tpu_custom_call.1} parent=5 // pred_check
        %p168 = pneg %p167
      $region14: #{tpu_custom_call.1} parent=5 // pred_check_branch
        %170 = sbr.rel (%p168) target = $region16
      $region15: #{tpu_custom_call.1} parent=5 // pred_region
        // Predicated region
        $region17: #{tpu_custom_call.1} parent=15 // pred_check
          %p171 = pneg %p56
        $region18: #{tpu_custom_call.1} parent=15 // pred_check_branch
          %173 = sbr.rel (%p171) target = $region20
        $region19: #{tpu_custom_call.1} parent=15 // pred_region
          %s174 = sand.u32 %s46, 1
          %s175 = scalar_lea.sflag [#allocation3], %s174
          %s176 = sand.u32 %s46, 1
          %s177 = smul.addr %s176, 8
          %s178 = scalar_lea.vmem [#allocation2], %s177
          %s179 = sadd.s32 %s25, %s26
          %p180 = scmp.lt.s32.totalorder %s179, 0
          %s181 = scalar_select %p180, %s179, 0
          %s182 = smul.u32 2, %s181
          %s183 = ssub.s32 1, %s182
          %s184 = smul.u32 64, %s183
          %s186 = ssub.s32 128, %s184
          %187 = vsyncadd %s175, %s186
          %p188 = scmp.ne.s32.totalorder 0, %s184
          %s189 = smul.addr %s182, 64
          %s190 = scalar_lea.hbm %s0, %s189
          %s191 = smul.u32 4, %s183
          %s192 = sshll.u32 %s178, 4
          %s193 = int_to_ptr.vmem [resolvable:$true] %s192
          %s194 = sshll.u32 %s191, 4
          %198 = dma.hbm_to_vmem [thread:$0]  (%p188), %s190, %s194, %s193, %s175, 64, 64, 4
        $region20: #{tpu_custom_call.1} parent=15 // pred_fallthru
          _
        // Predicated region
        $region21: #{tpu_custom_call.1} parent=15 // pred_check
          %p199 = pneg %p88
        $region22: #{tpu_custom_call.1} parent=15 // pred_check_branch
          %201 = sbr.rel (%p199) target = $region24
        $region23: #{tpu_custom_call.1} parent=15 // pred_region
          %s202 = sand.u32 %s78, 1
          %s203 = scalar_lea.sflag [#allocation6], %s202
          %s204 = sand.u32 %s78, 1
          %s205 = smul.addr %s204, 8
          %s206 = scalar_lea.vmem [#allocation5], %s205
          %s207 = sadd.s32 %s25, %s26
          %p208 = scmp.lt.s32.totalorder %s207, 0
          %s209 = scalar_select %p208, %s207, 0
          %s210 = smul.u32 2, %s209
          %s211 = ssub.s32 1, %s210
          %s212 = smul.u32 64, %s211
          %s214 = ssub.s32 128, %s212
          %215 = vsyncadd %s203, %s214
          %p216 = scmp.ne.s32.totalorder 0, %s212
          %s217 = smul.addr %s210, 64
          %s218 = scalar_lea.hbm %s1, %s217
          %s219 = smul.u32 4, %s211
          %s220 = sshll.u32 %s206, 4
          %s221 = int_to_ptr.vmem [resolvable:$true] %s220
          %s222 = sshll.u32 %s219, 4
          %226 = dma.hbm_to_vmem [thread:$0]  (%p216), %s218, %s222, %s221, %s203, 64, 64, 4
        $region24: #{tpu_custom_call.1} parent=15 // pred_fallthru
          _
        // Predicated region
        $region25: #{tpu_custom_call.1} parent=15 // pred_check
          %p227 = pneg %p120
        $region26: #{tpu_custom_call.1} parent=15 // pred_check_branch
          %229 = sbr.rel (%p227) target = $region28
        $region27: #{tpu_custom_call.1} parent=15 // pred_region
          %s230 = sadd.s32 %s25, %s26
          %p231 = scmp.lt.s32.totalorder %s230, 0
          %s232 = scalar_select %p231, %s230, 0
          %s233 = smul.u32 2, %s232
          %s234 = ssub.s32 1, %s233
          %s235 = smul.u32 64, %s234
          %p236 = scmp.lt.s32.totalorder %s233, 0
          %s237 = scalar_select %p236, %s233, 0
          %s238 = smul.addr %s237, 4
          %s239 = scalar_lea.vmem %s2, %s238
          %s240 = sadd.s32 %s25, %s26
          %p241 = scmp.lt.s32.totalorder %s240, 0
          %s242 = scalar_select %p241, %s240, 0
          %s243 = smul.u32 2, %s242
          %s244 = ssub.s32 1, %s243
          %s245 = smul.u32 64, %s244
        $region28: #{tpu_custom_call.1} parent=15 // pred_fallthru
          _
      $region16: #{tpu_custom_call.1} parent=5 // pred_fallthru
        _
      %p246 = scmp.le.s32.totalorder 1, %s18
      %p247 = scmp.lt.s32.totalorder %s18, 3
      %p248 = pnand %p246, %p247
      %p249 = pneg %p248
      // Predicated region
      $region29: #{tpu_custom_call.1} parent=5 // pred_check
        _
      $region30: #{tpu_custom_call.1} parent=5 // pred_check_branch
        %251 = sbr.rel (%p248) target = $region32
      $region31: #{tpu_custom_call.1} parent=5 // pred_region
        %s252 = ssub.s32 %s18, 1
        %s253 = sand.u32 %s49, 1
        %s254 = scalar_lea.sflag [#allocation3], %s253
        %s255 = sand.u32 %s49, 1
        %s256 = smul.addr %s255, 8
        %s257 = scalar_lea.vmem [#allocation2], %s256
        // Predicated region
        $region33: #{tpu_custom_call.1} parent=31 // pred_check
          %p258 = pneg %p62
        $region34: #{tpu_custom_call.1} parent=31 // pred_check_branch
          %260 = sbr.rel (%p258) target = $region36
        $region35: #{tpu_custom_call.1} parent=31 // pred_region
          %261 = dma.done %s254, 128
        $region36: #{tpu_custom_call.1} parent=31 // pred_fallthru
          _
        %s262 = sand.u32 %s81, 1
        %s263 = scalar_lea.sflag [#allocation6], %s262
        %s264 = sand.u32 %s81, 1
        %s265 = smul.addr %s264, 8
        %s266 = scalar_lea.vmem [#allocation5], %s265
        // Predicated region
        $region37: #{tpu_custom_call.1} parent=31 // pred_check
          %p267 = pneg %p94
        $region38: #{tpu_custom_call.1} parent=31 // pred_check_branch
          %269 = sbr.rel (%p267) target = $region40
        $region39: #{tpu_custom_call.1} parent=31 // pred_region
          %270 = dma.done %s263, 128
        $region40: #{tpu_custom_call.1} parent=31 // pred_fallthru
          _
        %s271 = sand.u32 %s49, 1
        %s272 = scalar_lea.sflag [#allocation3], %s271
        %s273 = sand.u32 %s49, 1
        %s274 = smul.addr %s273, 8
        %s275 = scalar_lea.vmem [#allocation2], %s274
        %p276 = pneg %p62
        %p277 = pneg %p59
        %s278 = sand.u32 %s81, 1
        %s279 = scalar_lea.sflag [#allocation6], %s278
        %s280 = sand.u32 %s81, 1
        %s281 = smul.addr %s280, 8
        %s282 = scalar_lea.vmem [#allocation5], %s281
        %p283 = pneg %p94
        %p284 = pneg %p91
        %s285 = sadd.s32 %s27, %s28
        %p286 = scmp.lt.s32.totalorder %s285, 0
        %s287 = scalar_select %p286, %s285, 0
        %s288 = smul.u32 2, %s287
        %s289 = ssub.s32 1, %s288
        %s290 = smul.u32 64, %s289
        %p291 = scmp.lt.s32.totalorder %s288, 0
        %s292 = scalar_select %p291, %s288, 0
        %s293 = smul.addr %s292, 4
        %s294 = scalar_lea.vmem %s2, %s293
        %p295 = pneg %p126
        %p296 = pneg %p123
        %p297 = pneg %p152
        %p298 = pneg %p149
        %s299 = sand.u32 %s139, 1
        %s300 = scalar_lea.sflag [#allocation4], %s299
        %s301 = sand.u32 %s139, 1
        %s302 = smul.addr %s301, 8
        %s303 = scalar_lea.vmem [#allocation7], %s302
        %s304 = sadd.s32 %s27, %s28
        %p305 = scmp.lt.s32.totalorder %s304, 0
        %s306 = scalar_select %p305, %s304, 0
        %s307 = smul.u32 2, %s306
        %s308 = ssub.s32 1, %s307
        %s309 = smul.u32 64, %s308
        %s310 = sadd.s32 %s27, %s28
        %p311 = scmp.lt.s32.totalorder %s310, 0
        %s312 = scalar_select %p311, %s310, 0
        %s313 = smul.u32 2, %s312
        %s314 = ssub.s32 1, %s313
        %s315 = smul.u32 64, %s314
        %s316 = sadd.s32 %s27, %s28
        %p317 = scmp.lt.s32.totalorder %s316, 0
        %s318 = scalar_select %p317, %s316, 0
        %s319 = smul.u32 2, %s318
        %s320 = ssub.s32 1, %s319
        %s321 = smul.u32 64, %s320
        %p322 = scmp.lt.s32.totalorder %s319, 0
        %s323 = scalar_select %p322, %s319, 0
        %s324 = smul.addr %s323, 4
        %s325 = scalar_lea.vmem %s2, %s324
        %s326 = sadd.s32 %s27, %s28
        %p327 = scmp.lt.s32.totalorder %s326, 0
        %s328 = scalar_select %p327, %s326, 0
        %s329 = smul.u32 2, %s328
        %s330 = ssub.s32 1, %s329
        %s331 = smul.u32 64, %s330
        %p332 = scmp.eq.s32.totalorder %s28, 0
        // Predicated region
        $region41: #{tpu_custom_call.1} parent=31 // pred_check
          %p333 = pneg %p332
        $region42: #{tpu_custom_call.1} parent=31 // pred_check_branch
          %335 = sbr.rel (%p333) target = $region44
        $region43: #{tpu_custom_call.1} parent=31 // pred_region
          %336 = vst [vmem:[%s303] sm:$0xff] 0.0
        $region44: #{tpu_custom_call.1} parent=31 // pred_fallthru
          _
        %v337 = vld [vmem:[%s257] sm:$0xff]
        %v338 = vld [vmem:[%s266] sm:$0xff]
        %v339 = vld [vmem:[%s325] sm:$0xff]
        %s340 = sadd.s32 %s27, %s28
        %s341 = smul.u32 %s340, 8
        %v342 = vlaneseq
        %v343 = vshrl.u32 %v342, 7
        %v344 = vstv %s341
        %v345 = vadd.s32 %v343, %v344
        %vm346 = vcmp.lt.s32.totalorder %v345, 4
        %v347 = vsel %vm346, 1, 0
        %vm348 = vcmp.eq.s32.totalorder %v347, 1
        %v349 = vsel %vm348, %v337, 0.0
        %v350 = vsel %vm348, %v338, 0.0
        %v351 = vsel %vm348, %v339, 1.0
        %v352 = vand.u32 2147483647, %v349
        %v353 = vsub.f32 0.0, %v352
        %v354 = vmul.f32 %v353, 1.442695
        %v355 = vpow.pop %v354
        %v356 = vadd.f32 %v355, 1.0
        %v357 = vrcp.pop %v356
        %vm358 = vcmp.ge.f32.partialorder %v349, 0.0
        %v359 = vmul.f32 %v355, %v357
        %v360 = vsel %vm358, %v357, %v359
        %v361 = vmul.f32 %v360, %v360
        %v362 = vmul.f32 %v361, 0.75
        %v363 = vsub.f32 1.0, %v351
        %v364 = vmul.f32 %v362, %v363
        %v365 = vmul.f32 %v350, %v351
        %v366 = vadd.f32 %v364, %v365
        %v367 = vmax.f32 %v349, 0.0
        %v368 = vmul.f32 %v349, %v350
        %v369 = vsub.f32 %v367, %v368
        %v370 = vadd.f32 %v355, 1.0
        %v371 = vlog2.pop %v370
        %v372 = vmul.f32 %v371, 0.6931472
        %v373 = vmul.f32 -0.5, %v355
        %v374 = vadd.f32 %v373, 1.0
        %v375 = vmul.f32 %v374, %v355
        %v376 = vand.u32 2147483647, %v355
        %vm377 = vcmp.lt.f32.partialorder %v376, 0.0004427343
        %v378 = vsel %vm377, %v375, %v372
        %v379 = vadd.f32 %v369, %v378
        %v380 = vmul.f32 %v379, %v366
        %v381 = vld [vmem:[%s303] sm:$0xff]
        %v382 = vadd.f32 %v380, 0.0
        %v383 = vadd.f32 %v381, %v382
        %384 = vst [vmem:[%s303] sm:$0xff] %v383
        %s385 = sand.u32 %s139, 1
        %s386 = scalar_lea.sflag [#allocation4], %s385
        %s387 = sand.u32 %s139, 1
        %s388 = smul.addr %s387, 8
        %s389 = scalar_lea.vmem [#allocation7], %s388
        // Predicated region
        $region45: #{tpu_custom_call.1} parent=31 // pred_check
          %p390 = pneg %p149
        $region46: #{tpu_custom_call.1} parent=31 // pred_check_branch
          %392 = sbr.rel (%p390) target = $region48
        $region47: #{tpu_custom_call.1} parent=31 // pred_region
          %s394 = ssub.s32 128, 128
          %395 = vsyncadd %s386, %s394
          %s396 = smul.addr %s27, 128
          %s397 = scalar_lea.hbm %s3, %s396
          %s399 = sshll.u32 %s389, 4
          %s400 = int_to_ptr.vmem [resolvable:$true] %s399
          %402 = dma.vmem_to_hbm [thread:$0]  %s400, 128, %s397, %s386
        $region48: #{tpu_custom_call.1} parent=31 // pred_fallthru
          _
      $region32: #{tpu_custom_call.1} parent=5 // pred_fallthru
        _
      %p403 = scmp.le.s32.totalorder 2, %s18
      // Predicated region
      $region49: #{tpu_custom_call.1} parent=5 // pred_check
        %p404 = pneg %p403
      $region50: #{tpu_custom_call.1} parent=5 // pred_check_branch
        %406 = sbr.rel (%p404) target = $region52
      $region51: #{tpu_custom_call.1} parent=5 // pred_region
        %s407 = ssub.s32 %s18, 2
        // Predicated region
        $region53: #{tpu_custom_call.1} parent=51 // pred_check
          %p408 = pneg %p155
        $region54: #{tpu_custom_call.1} parent=51 // pred_check_branch
          %410 = sbr.rel (%p408) target = $region56
        $region55: #{tpu_custom_call.1} parent=51 // pred_region
          %s411 = sand.u32 %s140, 1
          %s412 = scalar_lea.sflag [#allocation4], %s411
          %s413 = sand.u32 %s140, 1
          %s414 = smul.addr %s413, 8
          %s415 = scalar_lea.vmem [#allocation7], %s414
          %416 = dma.done %s412, 128
        $region56: #{tpu_custom_call.1} parent=51 // pred_fallthru
          _
      $region52: #{tpu_custom_call.1} parent=5 // pred_fallthru
        _
    $region6: #{tpu_custom_call.1} parent=1 // loop_footer
      %s22 = sadd.s32 1, %s18
    $region7: #{tpu_custom_call.1} parent=1 // loop_footer_branch
      %17 = sbr.rel target = $region3
    $region8: #{tpu_custom_call.1} parent=1 // loop_exit
      _
    %417 = vsyncpa [#allocation3], 1
    %s418 = scalar_lea.sflag [#allocation3], 1
    %419 = vsyncpa %s418, 1
    %420 = vsyncpa [#allocation6], 1
    %s421 = scalar_lea.sflag [#allocation6], 1
    %422 = vsyncpa %s421, 1
    %423 = vsyncpa [#allocation4], 1
    %s424 = scalar_lea.sflag [#allocation4], 1
    %425 = vsyncpa %s424, 1

</llo_original>
